<compile_context>
chip_gen: v7x
topology: tpu7x:2x2x1
jax: 0.10.0
libtpu: 0.0.40
codegen_flags: <defaults>
</compile_context>

<pallas_src>
import functools

import jax
import jax.numpy as jnp
from jax.experimental import pallas as pl
from jax.experimental.pallas import tpu as pltpu

LANE = 128  # lane-dense padding for the final output dimension


def fc3_kernel(x_ref, w1_ref, b1_ref, w2_ref, b2_ref, w3_ref, b3_ref, o_ref):
    # Layer 1: Linear(in_dim, 256) + ReLU   (bf16 operands, f32 accumulate)
    h1 = jnp.dot(x_ref[...], w1_ref[...], preferred_element_type=jnp.float32)
    h1 = jnp.maximum(h1 + b1_ref[...], 0.0)

    # Layer 2: Linear(256, 128) + ReLU
    h2 = jnp.dot(h1.astype(jnp.bfloat16), w2_ref[...],
                 preferred_element_type=jnp.float32)
    h2 = jnp.maximum(h2 + b2_ref[...], 0.0)

    # Layer 3: Linear(128, 128-padded num_classes); padded cols stay exactly 0.
    out = jnp.dot(h2.astype(jnp.bfloat16), w3_ref[...],
                  preferred_element_type=jnp.float32)
    o_ref[...] = (out + b3_ref[...]).astype(o_ref.dtype)


def prepare_fc3_params(w1, b1, w2, b2, w3, b3):
    """One-time conversion of FC3 params to the kernel's storage layout.

    w*: (in_features, out_features) f32, b*: (1, out_features) f32.
    Returns a dict of device arrays: bf16 weights, f32 biases, with the last
    layer zero-padded to LANE (=128) output columns.  Do this once at init —
    NOT per call — so the per-call HBM traffic is only the ~0.5 MB of bf16
    weights the kernel actually reads.
    """
    num_classes = w3.shape[1]
    assert num_classes <= LANE, "final layer padding assumes num_classes <= 128"
    w3_p = jnp.zeros((w3.shape[0], LANE), jnp.bfloat16)
    w3_p = w3_p.at[:, :num_classes].set(w3.astype(jnp.bfloat16))
    b3_p = jnp.zeros((1, LANE), jnp.float32).at[:, :num_classes].set(b3)
    return {
        "w1": w1.astype(jnp.bfloat16),
        "b1": b1.astype(jnp.float32),
        "w2": w2.astype(jnp.bfloat16),
        "b2": b2.astype(jnp.float32),
        "w3": w3_p,
        "b3": b3_p,
        # Caution: padded columns [num_classes:128] must stay zero; regenerate
        # these params if num_classes changes.
        "num_classes": num_classes,
    }


@functools.partial(jax.jit, static_argnames=("num_classes",))
def _fc3_forward_impl(x, w1, b1, w2, b2, w3_p, b3_p, *, num_classes):
    B = x.shape[0]
    n_pad = w3_p.shape[1]

    # The only per-call conversion left: activations to bf16 (fused under jit).
    x_bf = x.astype(jnp.bfloat16)

    full = lambda shape: pl.BlockSpec(shape, lambda: (0,) * len(shape))

    # Advisory cost estimate (memory-bound: ~0.5 MB of bf16 weights per call).
    flops = 2 * B * (w1.shape[0] * w1.shape[1]
                     + w2.shape[0] * w2.shape[1]
                     + w3_p.shape[0] * n_pad)
    bytes_accessed = (
        x_bf.size * 2 + w1.size * 2 + w2.size * 2 + w3_p.size * 2
        + b1.size * 4 + b2.size * 4 + b3_p.size * 4
        + B * n_pad * 4
    )

    out_padded = pl.pallas_call(
        fc3_kernel,
        out_shape=jax.ShapeDtypeStruct((B, n_pad), jnp.float32),
        grid_spec=pltpu.PrefetchScalarGridSpec(
            num_scalar_prefetch=0,
            grid=(),  # whole problem fits in VMEM; tiling would add pure overhead
            in_specs=[
                full(x_bf.shape),
                full(w1.shape),
                full(b1.shape),
                full(w2.shape),
                full(b2.shape),
                full(w3_p.shape),
                full(b3_p.shape),
            ],
            out_specs=full((B, n_pad)),
        ),
        cost_estimate=pl.CostEstimate(
            flops=flops, transcendentals=0, bytes_accessed=bytes_accessed
        ),
    )(x_bf, w1, b1, w2, b2, w3_p, b3_p)

    return out_padded[:, :num_classes]


def fc3_forward(x, params):
    """x: (B, in_dim) f32; params from prepare_fc3_params. Returns (B, num_classes) f32."""
    return _fc3_forward_impl(
        x, params["w1"], params["b1"], params["w2"], params["b2"],
        params["w3"], params["b3"], num_classes=params["num_classes"],
    )


def init_linear_params(key, in_features, out_features):
    """PyTorch nn.Linear default init: U(-1/sqrt(in), 1/sqrt(in))."""
    kw, kb = jax.random.split(key)
    bound = 1.0 / jnp.sqrt(jnp.float32(in_features))
    # Stored as (in_features, out_features) — transposed vs. PyTorch.
    w = jax.random.uniform(
        kw, (in_features, out_features), jnp.float32, -bound, bound
    )
    b = jax.random.uniform(kb, (1, out_features), jnp.float32, -bound, bound)
    return w, b


if __name__ == "__main__":
    # Module-consistent shapes:
    #   in_dim  = flattened HuBERT feature dim (synthetic: 768)
    #   classes = number of keyword labels     (synthetic: 12)
    B, IN_DIM, H1, H2, NUM_CLASSES = 8, 768, 256, 128, 12

    key = jax.random.PRNGKey(0)
    kx, k1, k2, k3 = jax.random.split(key, 4)

    x = jax.random.normal(kx, (B, IN_DIM), jnp.float32)
    w1, b1 = init_linear_params(k1, IN_DIM, H1)
    w2, b2 = init_linear_params(k2, H1, H2)
    w3, b3 = init_linear_params(k3, H2, NUM_CLASSES)

    # One-time parameter preparation (bf16 storage, padded last layer).
    params = prepare_fc3_params(w1, b1, w2, b2, w3, b3)

    out = fc3_forward(x, params)
    out = jax.block_until_ready(out)

    # Reference in plain JAX with the same bf16-rounded weights/inputs so the
    # comparison isolates kernel correctness (bf16 storage changes numerics;
    # the kernel additionally rounds h1/h2 to bf16, absorbed by the tolerance).
    xb = x.astype(jnp.bfloat16).astype(jnp.float32)
    w1b = w1.astype(jnp.bfloat16).astype(jnp.float32)
    w2b = w2.astype(jnp.bfloat16).astype(jnp.float32)
    w3b = w3.astype(jnp.bfloat16).astype(jnp.float32)
    ref = jnp.maximum(xb @ w1b + b1, 0.0)
    ref = jnp.maximum(ref @ w2b + b2, 0.0)
    ref = ref @ w3b + b3

    assert out.shape == (B, NUM_CLASSES)
    assert jnp.allclose(out, ref, atol=5e-2, rtol=5e-2), (
        float(jnp.max(jnp.abs(out - ref)))
    )

    print("KERNEL_OK")
</pallas_src>

<mosaic_0001>
module attributes {stable_mosaic.version = 11 : i64} {
  func.func @fc3_kernel(%arg0: memref<8x768xbf16, #tpu.memory_space<vmem>>, %arg1: memref<768x256xbf16, #tpu.memory_space<vmem>>, %arg2: memref<1x256xf32, #tpu.memory_space<vmem>>, %arg3: memref<256x128xbf16, #tpu.memory_space<vmem>>, %arg4: memref<1x128xf32, #tpu.memory_space<vmem>>, %arg5: memref<128x128xbf16, #tpu.memory_space<vmem>>, %arg6: memref<1x128xf32, #tpu.memory_space<vmem>>, %arg7: memref<8x128xf32, #tpu.memory_space<vmem>>) attributes {dimension_semantics = [], scalar_prefetch = 0 : i64, scratch_operands = 0 : i64, tpu.core_type = #tpu.core_type<tc>} {
    %c0 = arith.constant 0 : index
    %c0_0 = arith.constant 0 : index
    %0 = vector.load %arg0[%c0, %c0_0] : memref<8x768xbf16, #tpu.memory_space<vmem>>, vector<8x768xbf16>
    %c0_1 = arith.constant 0 : index
    %c0_2 = arith.constant 0 : index
    %1 = vector.load %arg1[%c0_1, %c0_2] : memref<768x256xbf16, #tpu.memory_space<vmem>>, vector<768x256xbf16>
    %cst = arith.constant dense<0.000000e+00> : vector<8x256xf32>
    %2 = tpu.matmul %0, %1, %cst {dimension_numbers = #tpu.dot_dimension_numbers<[1], [0], [0], [1], [0, 0, 1, 1], [], []>} : vector<8x768xbf16>, vector<768x256xbf16>, vector<8x256xf32> -> vector<8x256xf32>
    %c0_3 = arith.constant 0 : index
    %c0_4 = arith.constant 0 : index
    %3 = vector.load %arg2[%c0_3, %c0_4] : memref<1x256xf32, #tpu.memory_space<vmem>>, vector<1x256xf32>
    %4 = vector.broadcast %3 : vector<1x256xf32> to vector<8x256xf32>
    %5 = arith.addf %2, %4 : vector<8x256xf32>
    %cst_5 = arith.constant 0.000000e+00 : f32
    %6 = vector.broadcast %cst_5 : f32 to vector<8x256xf32>
    %7 = arith.maximumf %5, %6 : vector<8x256xf32>
    %8 = arith.truncf %7 : vector<8x256xf32> to vector<8x256xbf16>
    %c0_6 = arith.constant 0 : index
    %c0_7 = arith.constant 0 : index
    %9 = vector.load %arg3[%c0_6, %c0_7] : memref<256x128xbf16, #tpu.memory_space<vmem>>, vector<256x128xbf16>
    %cst_8 = arith.constant dense<0.000000e+00> : vector<8x128xf32>
    %10 = tpu.matmul %8, %9, %cst_8 {dimension_numbers = #tpu.dot_dimension_numbers<[1], [0], [0], [1], [0, 0, 1, 1], [], []>} : vector<8x256xbf16>, vector<256x128xbf16>, vector<8x128xf32> -> vector<8x128xf32>
    %c0_9 = arith.constant 0 : index
    %c0_10 = arith.constant 0 : index
    %11 = vector.load %arg4[%c0_9, %c0_10] : memref<1x128xf32, #tpu.memory_space<vmem>>, vector<1x128xf32>
    %12 = vector.broadcast %11 : vector<1x128xf32> to vector<8x128xf32>
    %13 = arith.addf %10, %12 : vector<8x128xf32>
    %cst_11 = arith.constant 0.000000e+00 : f32
    %14 = vector.broadcast %cst_11 : f32 to vector<8x128xf32>
    %15 = arith.maximumf %13, %14 : vector<8x128xf32>
    %16 = arith.truncf %15 : vector<8x128xf32> to vector<8x128xbf16>
    %c0_12 = arith.constant 0 : index
    %c0_13 = arith.constant 0 : index
    %17 = vector.load %arg5[%c0_12, %c0_13] : memref<128x128xbf16, #tpu.memory_space<vmem>>, vector<128x128xbf16>
    %cst_14 = arith.constant dense<0.000000e+00> : vector<8x128xf32>
    %18 = tpu.matmul %16, %17, %cst_14 {dimension_numbers = #tpu.dot_dimension_numbers<[1], [0], [0], [1], [0, 0, 1, 1], [], []>} : vector<8x128xbf16>, vector<128x128xbf16>, vector<8x128xf32> -> vector<8x128xf32>
    %c0_15 = arith.constant 0 : index
    %c0_16 = arith.constant 0 : index
    %19 = vector.load %arg6[%c0_15, %c0_16] : memref<1x128xf32, #tpu.memory_space<vmem>>, vector<1x128xf32>
    %20 = vector.broadcast %19 : vector<1x128xf32> to vector<8x128xf32>
    %21 = arith.addf %18, %20 : vector<8x128xf32>
    %c0_17 = arith.constant 0 : index
    %c0_18 = arith.constant 0 : index
    %22 = vector.load %arg7[%c0_17, %c0_18] : memref<8x128xf32, #tpu.memory_space<vmem>>, vector<8x128xf32>
    tpu.vector_store %arg7[%c0_17, %c0_18], %21 {strides = array<i32>} : memref<8x128xf32, #tpu.memory_space<vmem>>, vector<8x128xf32>,
    return
  }
}

</mosaic_0001>

<llo_original>
// kernel: _fc3_forward_impl.1
$region0: #{_fc3_forward_impl.1}
  #allocation0 [shape = 'u32[]', space=smem, size = 0x4, offset = 0x4, fixed_abs, tag = 'smem constant byte address 0x4 - core index']
  #allocation1 [shape = 'u32[144,128]{1,0:T(1,128)}', space=vmem, size = 0x12000, scoped, tag = 'internal scratch']
  %s0 = inlined_call_operand.vmem [shape: bf16[8,768], index: 0, kind: input, shape index: {}]
  %s1 = inlined_call_operand.hbm [shape: bf16[768,256], index: 1, kind: input, shape index: {}]
  %s2 = inlined_call_operand.vmem [shape: f32[1,256], index: 2, kind: input, shape index: {}]
  %s3 = inlined_call_operand.hbm [shape: bf16[256,128], index: 3, kind: input, shape index: {}]
  %s4 = inlined_call_operand.vmem [shape: f32[1,128], index: 4, kind: input, shape index: {}]
  %s5 = inlined_call_operand.vmem [shape: bf16[128,128], index: 5, kind: input, shape index: {}]
  %s6 = inlined_call_operand.vmem [shape: f32[1,128], index: 6, kind: input, shape index: {}]
  %s7 = inlined_call_operand.hbm [shape: f32[8,128], index: 7, kind: output, shape index: {}]
  %s8 = sld [smem:[#allocation0]]
  $region46: #{_fc3_forward_impl.1} parent=0
    _
  %s10 = ssub.s32 1, %s8
  %s11 = scalar_select 0, %s10, %s8
  $region1: #{_fc3_forward_impl.1} parent=0
    #allocation2 [shape = 'u8[393216]{0}', space=vmem, size = 0x60000, scoped, tag = 'input window, operand 1, single buffered']
    #allocation3 [shape = 's32[1]{0}', space=sflag, size = 0x4, scoped, tag = 'scoped memory for _fc3_forward_impl.1']
    #allocation4 [shape = 's32[1]{0}', space=sflag, size = 0x4, scoped, tag = 'scoped memory for _fc3_forward_impl.1']
    #allocation5 [shape = 'u8[65536]{0}', space=vmem, size = 0x10000, scoped, tag = 'input window, operand 3, single buffered']
    #allocation6 [shape = 's32[1]{0}', space=sflag, size = 0x4, scoped, tag = 'scoped memory for _fc3_forward_impl.1']
    #allocation7 [shape = 'u8[4096]{0}', space=vmem, size = 0x1000, scoped, tag = 'output window, operand 0, single buffered']
    %12 = vsyncpa [#allocation3], 0
    %13 = vsyncpa [#allocation6], 0
    %14 = vsyncpa [#allocation4], 0
    // Predicated region
    $region2: #{_fc3_forward_impl.1} parent=1 // pred_check
      _
    $region3: #{_fc3_forward_impl.1} parent=1 // pred_check_branch
      %16 = sbr.rel (0) target = $region5
    $region4: #{_fc3_forward_impl.1} parent=1 // pred_region
      _
    $region5: #{_fc3_forward_impl.1} parent=1 // pred_fallthru
      _
    // Predicated region
    $region6: #{_fc3_forward_impl.1} parent=1 // pred_check
      _
    $region7: #{_fc3_forward_impl.1} parent=1 // pred_check_branch
      %18 = sbr.rel (0) target = $region9
    $region8: #{_fc3_forward_impl.1} parent=1 // pred_region
      %s20 = ssub.s32 12288, 12288
      %21 = vsyncadd [#allocation3], %s20
      %s22 = sshll.u32 [#allocation2], 4
      %s23 = int_to_ptr.vmem [resolvable:$true] %s22
      %28 = dma.hbm_to_vmem [thread:$0]  %s1, 12288, %s23, [#allocation3], 128, 128, 8
    $region9: #{_fc3_forward_impl.1} parent=1 // pred_fallthru
      _
    // Predicated region
    $region10: #{_fc3_forward_impl.1} parent=1 // pred_check
      _
    $region11: #{_fc3_forward_impl.1} parent=1 // pred_check_branch
      %30 = sbr.rel (0) target = $region13
    $region12: #{_fc3_forward_impl.1} parent=1 // pred_region
      _
    $region13: #{_fc3_forward_impl.1} parent=1 // pred_fallthru
      _
    // Predicated region
    $region14: #{_fc3_forward_impl.1} parent=1 // pred_check
      _
    $region15: #{_fc3_forward_impl.1} parent=1 // pred_check_branch
      %32 = sbr.rel (0) target = $region17
    $region16: #{_fc3_forward_impl.1} parent=1 // pred_region
      %s34 = ssub.s32 2048, 2048
      %35 = vsyncadd [#allocation6], %s34
      %s36 = sshll.u32 [#allocation5], 4
      %s37 = int_to_ptr.vmem [resolvable:$true] %s36
      %42 = dma.hbm_to_vmem [thread:$0]  %s3, 2048, %s37, [#allocation6], 64, 64, 4
    $region17: #{_fc3_forward_impl.1} parent=1 // pred_fallthru
      _
    // Predicated region
    $region18: #{_fc3_forward_impl.1} parent=1 // pred_check
      _
    $region19: #{_fc3_forward_impl.1} parent=1 // pred_check_branch
      %44 = sbr.rel (0) target = $region21
    $region20: #{_fc3_forward_impl.1} parent=1 // pred_region
      _
    $region21: #{_fc3_forward_impl.1} parent=1 // pred_fallthru
      _
    // Predicated region
    $region22: #{_fc3_forward_impl.1} parent=1 // pred_check
      _
    $region23: #{_fc3_forward_impl.1} parent=1 // pred_check_branch
      %46 = sbr.rel (0) target = $region25
    $region24: #{_fc3_forward_impl.1} parent=1 // pred_region
      _
    $region25: #{_fc3_forward_impl.1} parent=1 // pred_fallthru
      _
    // Predicated region
    $region26: #{_fc3_forward_impl.1} parent=1 // pred_check
      _
    $region27: #{_fc3_forward_impl.1} parent=1 // pred_check_branch
      %48 = sbr.rel (0) target = $region29
    $region28: #{_fc3_forward_impl.1} parent=1 // pred_region
      _
    $region29: #{_fc3_forward_impl.1} parent=1 // pred_fallthru
      _
    // Predicated region
    $region30: #{_fc3_forward_impl.1} parent=1 // pred_check
      _
    $region31: #{_fc3_forward_impl.1} parent=1 // pred_check_branch
      %50 = sbr.rel (0) target = $region33
    $region32: #{_fc3_forward_impl.1} parent=1 // pred_region
      %51 = dma.done [#allocation3], 12288
    $region33: #{_fc3_forward_impl.1} parent=1 // pred_fallthru
      _
    // Predicated region
    $region34: #{_fc3_forward_impl.1} parent=1 // pred_check
      _
    $region35: #{_fc3_forward_impl.1} parent=1 // pred_check_branch
      %53 = sbr.rel (0) target = $region37
    $region36: #{_fc3_forward_impl.1} parent=1 // pred_region
      %54 = dma.done [#allocation6], 2048
    $region37: #{_fc3_forward_impl.1} parent=1 // pred_fallthru
      _
    %v56 = vld [vmem:[%s0] sm:$0xff]
    %v57 = vld [vmem:[%s0 + $0x8] sm:$0xff]
    %v58 = vld [vmem:[%s0 + $0x10] sm:$0xff]
    %v59 = vld [vmem:[#allocation2] sm:$0xff]
    %v60 = vld [vmem:[#allocation2 + $0x8] sm:$0xff]
    %v61 = vld [vmem:[#allocation2 + $0x10] sm:$0xff]
    %v62 = vld [vmem:[#allocation2 + $0x18] sm:$0xff]
    %v63 = vld [vmem:[#allocation2 + $0x20] sm:$0xff]
    %v64 = vld [vmem:[#allocation2 + $0x28] sm:$0xff]
    %v65 = vld [vmem:[#allocation2 + $0x30] sm:$0xff]
    %v66 = vld [vmem:[#allocation2 + $0x38] sm:$0xff]
    %v67 = vld [vmem:[#allocation2 + $0x40] sm:$0xff]
    %v68 = vld [vmem:[#allocation2 + $0x48] sm:$0xff]
    %v69 = vld [vmem:[#allocation2 + $0x50] sm:$0xff]
    %v70 = vld [vmem:[#allocation2 + $0x58] sm:$0xff]
    %v71 = vld [vmem:[#allocation2 + $0x60] sm:$0xff]
    %v72 = vld [vmem:[#allocation2 + $0x68] sm:$0xff]
    %v73 = vld [vmem:[#allocation2 + $0x70] sm:$0xff]
    %v74 = vld [vmem:[#allocation2 + $0x78] sm:$0xff]
    %v75 = vld [vmem:[#allocation2 + $0x80] sm:$0xff]
    %v76 = vld [vmem:[#allocation2 + $0x88] sm:$0xff]
    %v77 = vld [vmem:[#allocation2 + $0x90] sm:$0xff]
    %v78 = vld [vmem:[#allocation2 + $0x98] sm:$0xff]
    %v79 = vld [vmem:[#allocation2 + $0xa0] sm:$0xff]
    %v80 = vld [vmem:[#allocation2 + $0xa8] sm:$0xff]
    %v81 = vld [vmem:[#allocation2 + $0xb0] sm:$0xff]
    %v82 = vld [vmem:[#allocation2 + $0xb8] sm:$0xff]
    %v83 = vld [vmem:[#allocation2 + $0xc0] sm:$0xff]
    %v84 = vld [vmem:[#allocation2 + $0xc8] sm:$0xff]
    %v85 = vld [vmem:[#allocation2 + $0xd0] sm:$0xff]
    %v86 = vld [vmem:[#allocation2 + $0xd8] sm:$0xff]
    %v87 = vld [vmem:[#allocation2 + $0xe0] sm:$0xff]
    %v88 = vld [vmem:[#allocation2 + $0xe8] sm:$0xff]
    %v89 = vld [vmem:[#allocation2 + $0xf0] sm:$0xff]
    %v90 = vld [vmem:[#allocation2 + $0xf8] sm:$0xff]
    %v91 = vld [vmem:[#allocation2 + $0x100] sm:$0xff]
    %v92 = vld [vmem:[#allocation2 + $0x108] sm:$0xff]
    %v93 = vld [vmem:[#allocation2 + $0x110] sm:$0xff]
    %v94 = vld [vmem:[#allocation2 + $0x118] sm:$0xff]
    %v95 = vld [vmem:[#allocation2 + $0x120] sm:$0xff]
    %v96 = vld [vmem:[#allocation2 + $0x128] sm:$0xff]
    %v97 = vld [vmem:[#allocation2 + $0x130] sm:$0xff]
    %v98 = vld [vmem:[#allocation2 + $0x138] sm:$0xff]
    %v99 = vld [vmem:[#allocation2 + $0x140] sm:$0xff]
    %v100 = vld [vmem:[#allocation2 + $0x148] sm:$0xff]
    %v101 = vld [vmem:[#allocation2 + $0x150] sm:$0xff]
    %v102 = vld [vmem:[#allocation2 + $0x158] sm:$0xff]
    %v103 = vld [vmem:[#allocation2 + $0x160] sm:$0xff]
    %v104 = vld [vmem:[#allocation2 + $0x168] sm:$0xff]
    %v105 = vld [vmem:[#allocation2 + $0x170] sm:$0xff]
    %v106 = vld [vmem:[#allocation2 + $0x178] sm:$0xff]
    %v107 = vld [vmem:[#allocation2 + $0x180] sm:$0xff]
    %v108 = vld [vmem:[#allocation2 + $0x188] sm:$0xff]
    %v109 = vld [vmem:[#allocation2 + $0x190] sm:$0xff]
    %v110 = vld [vmem:[#allocation2 + $0x198] sm:$0xff]
    %v111 = vld [vmem:[#allocation2 + $0x1a0] sm:$0xff]
    %v112 = vld [vmem:[#allocation2 + $0x1a8] sm:$0xff]
    %v113 = vld [vmem:[#allocation2 + $0x1b0] sm:$0xff]
    %v114 = vld [vmem:[#allocation2 + $0x1b8] sm:$0xff]
    %v115 = vld [vmem:[#allocation2 + $0x1c0] sm:$0xff]
    %v116 = vld [vmem:[#allocation2 + $0x1c8] sm:$0xff]
    %v117 = vld [vmem:[#allocation2 + $0x1d0] sm:$0xff]
    %v118 = vld [vmem:[#allocation2 + $0x1d8] sm:$0xff]
    %v119 = vld [vmem:[#allocation2 + $0x1e0] sm:$0xff]
    %v120 = vld [vmem:[#allocation2 + $0x1e8] sm:$0xff]
    %v121 = vld [vmem:[#allocation2 + $0x1f0] sm:$0xff]
    %v122 = vld [vmem:[#allocation2 + $0x1f8] sm:$0xff]
    %v123 = vld [vmem:[#allocation2 + $0x200] sm:$0xff]
    %v124 = vld [vmem:[#allocation2 + $0x208] sm:$0xff]
    %v125 = vld [vmem:[#allocation2 + $0x210] sm:$0xff]
    %v126 = vld [vmem:[#allocation2 + $0x218] sm:$0xff]
    %v127 = vld [vmem:[#allocation2 + $0x220] sm:$0xff]
    %v128 = vld [vmem:[#allocation2 + $0x228] sm:$0xff]
    %v129 = vld [vmem:[#allocation2 + $0x230] sm:$0xff]
    %v130 = vld [vmem:[#allocation2 + $0x238] sm:$0xff]
    %v131 = vld [vmem:[#allocation2 + $0x240] sm:$0xff]
    %v132 = vld [vmem:[#allocation2 + $0x248] sm:$0xff]
    %v133 = vld [vmem:[#allocation2 + $0x250] sm:$0xff]
    %v134 = vld [vmem:[#allocation2 + $0x258] sm:$0xff]
    %v135 = vld [vmem:[#allocation2 + $0x260] sm:$0xff]
    %v136 = vld [vmem:[#allocation2 + $0x268] sm:$0xff]
    %v137 = vld [vmem:[#allocation2 + $0x270] sm:$0xff]
    %v138 = vld [vmem:[#allocation2 + $0x278] sm:$0xff]
    %v139 = vld [vmem:[#allocation2 + $0x280] sm:$0xff]
    %v140 = vld [vmem:[#allocation2 + $0x288] sm:$0xff]
    %v141 = vld [vmem:[#allocation2 + $0x290] sm:$0xff]
    %v142 = vld [vmem:[#allocation2 + $0x298] sm:$0xff]
    %v143 = vld [vmem:[#allocation2 + $0x2a0] sm:$0xff]
    %v144 = vld [vmem:[#allocation2 + $0x2a8] sm:$0xff]
    %v145 = vld [vmem:[#allocation2 + $0x2b0] sm:$0xff]
    %v146 = vld [vmem:[#allocation2 + $0x2b8] sm:$0xff]
    %v147 = vld [vmem:[#allocation2 + $0x2c0] sm:$0xff]
    %v148 = vld [vmem:[#allocation2 + $0x2c8] sm:$0xff]
    %v149 = vld [vmem:[#allocation2 + $0x2d0] sm:$0xff]
    %v150 = vld [vmem:[#allocation2 + $0x2d8] sm:$0xff]
    %v151 = vld [vmem:[#allocation2 + $0x2e0] sm:$0xff]
    %v152 = vld [vmem:[#allocation2 + $0x2e8] sm:$0xff]
    %v153 = vld [vmem:[#allocation2 + $0x2f0] sm:$0xff]
    %v154 = vld [vmem:[#allocation2 + $0x2f8] sm:$0xff]
    %v155 = vld [vmem:[%s2] sm:$0x3]
    %v157 = vlaneseq
    %v158 = vshrl.u32 %v157, 7
    %v159 = vsub.s32 0, %v158
    %v160 = vrot.slane %v155, %v159
    %v161 = vlaneseq
    %v162 = vshrl.u32 %v161, 7
    %v163 = vsub.s32 1, %v162
    %v164 = vrot.slane %v155, %v163
    %v170 = vunpack.c.l.b16 %v56
    %v171 = vunpack.c.h.b16 %v56
    %v172 = vunpack.c.l.b16 %v57
    %v173 = vunpack.c.h.b16 %v57
    %v174 = vunpack.c.l.b16 %v58
    %v175 = vunpack.c.h.b16 %v58
    %v176 = vpack.c.b16 %v170, %v170
    %v177 = vpack.c.b16 %v171, %v171
    %v178 = vpack.c.b16 %v172, %v172
    %v179 = vpack.c.b16 %v173, %v173
    %v180 = vpack.c.b16 %v174, %v174
    %v181 = vpack.c.b16 %v175, %v175
    %v284 = vunpack.c.l.b16 %v59
    %v285 = vunpack.c.h.b16 %v59
    %v286 = vunpack.c.l.b16 %v60
    %v287 = vunpack.c.h.b16 %v60
    %v288 = vunpack.c.l.b16 %v61
    %v289 = vunpack.c.h.b16 %v61
    %v290 = vunpack.c.l.b16 %v62
    %v291 = vunpack.c.h.b16 %v62
    %v292 = vunpack.c.l.b16 %v63
    %v293 = vunpack.c.h.b16 %v63
    %v294 = vunpack.c.l.b16 %v64
    %v295 = vunpack.c.h.b16 %v64
    %v296 = vunpack.c.l.b16 %v65
    %v297 = vunpack.c.h.b16 %v65
    %v298 = vunpack.c.l.b16 %v66
    %v299 = vunpack.c.h.b16 %v66
    %v300 = vunpack.c.l.b16 %v67
    %v301 = vunpack.c.h.b16 %v67
    %v302 = vunpack.c.l.b16 %v68
    %v303 = vunpack.c.h.b16 %v68
    %v304 = vunpack.c.l.b16 %v69
    %v305 = vunpack.c.h.b16 %v69
    %v306 = vunpack.c.l.b16 %v70
    %v307 = vunpack.c.h.b16 %v70
    %v308 = vunpack.c.l.b16 %v71
    %v309 = vunpack.c.h.b16 %v71
    %v310 = vunpack.c.l.b16 %v72
    %v311 = vunpack.c.h.b16 %v72
    %v312 = vunpack.c.l.b16 %v73
    %v313 = vunpack.c.h.b16 %v73
    %v314 = vunpack.c.l.b16 %v74
    %v315 = vunpack.c.h.b16 %v74
    %v316 = vunpack.c.l.b16 %v75
    %v317 = vunpack.c.h.b16 %v75
    %v318 = vunpack.c.l.b16 %v76
    %v319 = vunpack.c.h.b16 %v76
    %v320 = vunpack.c.l.b16 %v77
    %v321 = vunpack.c.h.b16 %v77
    %v322 = vunpack.c.l.b16 %v78
    %v323 = vunpack.c.h.b16 %v78
    %v324 = vunpack.c.l.b16 %v79
    %v325 = vunpack.c.h.b16 %v79
    %v326 = vunpack.c.l.b16 %v80
    %v327 = vunpack.c.h.b16 %v80
    %v328 = vunpack.c.l.b16 %v81
    %v329 = vunpack.c.h.b16 %v81
    %v330 = vunpack.c.l.b16 %v82
    %v331 = vunpack.c.h.b16 %v82
    %v332 = vunpack.c.l.b16 %v83
    %v333 = vunpack.c.h.b16 %v83
    %v334 = vunpack.c.l.b16 %v84
    %v335 = vunpack.c.h.b16 %v84
    %v336 = vunpack.c.l.b16 %v85
    %v337 = vunpack.c.h.b16 %v85
    %v338 = vunpack.c.l.b16 %v86
    %v339 = vunpack.c.h.b16 %v86
    %v340 = vunpack.c.l.b16 %v87
    %v341 = vunpack.c.h.b16 %v87
    %v342 = vunpack.c.l.b16 %v88
    %v343 = vunpack.c.h.b16 %v88
    %v344 = vunpack.c.l.b16 %v89
    %v345 = vunpack.c.h.b16 %v89
    %v346 = vunpack.c.l.b16 %v90
    %v347 = vunpack.c.h.b16 %v90
    %v348 = vunpack.c.l.b16 %v91
    %v349 = vunpack.c.h.b16 %v91
    %v350 = vunpack.c.l.b16 %v92
    %v351 = vunpack.c.h.b16 %v92
    %v352 = vunpack.c.l.b16 %v93
    %v353 = vunpack.c.h.b16 %v93
    %v354 = vunpack.c.l.b16 %v94
    %v355 = vunpack.c.h.b16 %v94
    %v356 = vunpack.c.l.b16 %v95
    %v357 = vunpack.c.h.b16 %v95
    %v358 = vunpack.c.l.b16 %v96
    %v359 = vunpack.c.h.b16 %v96
    %v360 = vunpack.c.l.b16 %v97
    %v361 = vunpack.c.h.b16 %v97
    %v362 = vunpack.c.l.b16 %v98
    %v363 = vunpack.c.h.b16 %v98
    %v364 = vunpack.c.l.b16 %v99
    %v365 = vunpack.c.h.b16 %v99
    %v366 = vunpack.c.l.b16 %v100
    %v367 = vunpack.c.h.b16 %v100
    %v368 = vunpack.c.l.b16 %v101
    %v369 = vunpack.c.h.b16 %v101
    %v370 = vunpack.c.l.b16 %v102
    %v371 = vunpack.c.h.b16 %v102
    %v372 = vunpack.c.l.b16 %v103
    %v373 = vunpack.c.h.b16 %v103
    %v374 = vunpack.c.l.b16 %v104
    %v375 = vunpack.c.h.b16 %v104
    %v376 = vunpack.c.l.b16 %v105
    %v377 = vunpack.c.h.b16 %v105
    %v378 = vunpack.c.l.b16 %v106
    %v379 = vunpack.c.h.b16 %v106
    %v380 = vunpack.c.l.b16 %v107
    %v381 = vunpack.c.h.b16 %v107
    %v382 = vunpack.c.l.b16 %v108
    %v383 = vunpack.c.h.b16 %v108
    %v384 = vunpack.c.l.b16 %v109
    %v385 = vunpack.c.h.b16 %v109
    %v386 = vunpack.c.l.b16 %v110
    %v387 = vunpack.c.h.b16 %v110
    %v388 = vunpack.c.l.b16 %v111
    %v389 = vunpack.c.h.b16 %v111
    %v390 = vunpack.c.l.b16 %v112
    %v391 = vunpack.c.h.b16 %v112
    %v392 = vunpack.c.l.b16 %v113
    %v393 = vunpack.c.h.b16 %v113
    %v394 = vunpack.c.l.b16 %v114
    %v395 = vunpack.c.h.b16 %v114
    %v396 = vunpack.c.l.b16 %v115
    %v397 = vunpack.c.h.b16 %v115
    %v398 = vunpack.c.l.b16 %v116
    %v399 = vunpack.c.h.b16 %v116
    %v400 = vunpack.c.l.b16 %v117
    %v401 = vunpack.c.h.b16 %v117
    %v402 = vunpack.c.l.b16 %v118
    %v403 = vunpack.c.h.b16 %v118
    %v404 = vunpack.c.l.b16 %v119
    %v405 = vunpack.c.h.b16 %v119
    %v406 = vunpack.c.l.b16 %v120
    %v407 = vunpack.c.h.b16 %v120
    %v408 = vunpack.c.l.b16 %v121
    %v409 = vunpack.c.h.b16 %v121
    %v410 = vunpack.c.l.b16 %v122
    %v411 = vunpack.c.h.b16 %v122
    %v412 = vunpack.c.l.b16 %v123
    %v413 = vunpack.c.h.b16 %v123
    %v414 = vunpack.c.l.b16 %v124
    %v415 = vunpack.c.h.b16 %v124
    %v416 = vunpack.c.l.b16 %v125
    %v417 = vunpack.c.h.b16 %v125
    %v418 = vunpack.c.l.b16 %v126
    %v419 = vunpack.c.h.b16 %v126
    %v420 = vunpack.c.l.b16 %v127
    %v421 = vunpack.c.h.b16 %v127
    %v422 = vunpack.c.l.b16 %v128
    %v423 = vunpack.c.h.b16 %v128
    %v424 = vunpack.c.l.b16 %v129
    %v425 = vunpack.c.h.b16 %v129
    %v426 = vunpack.c.l.b16 %v130
    %v427 = vunpack.c.h.b16 %v130
    %v428 = vunpack.c.l.b16 %v131
    %v429 = vunpack.c.h.b16 %v131
    %v430 = vunpack.c.l.b16 %v132
    %v431 = vunpack.c.h.b16 %v132
    %v432 = vunpack.c.l.b16 %v133
    %v433 = vunpack.c.h.b16 %v133
    %v434 = vunpack.c.l.b16 %v134
    %v435 = vunpack.c.h.b16 %v134
    %v436 = vunpack.c.l.b16 %v135
    %v437 = vunpack.c.h.b16 %v135
    %v438 = vunpack.c.l.b16 %v136
    %v439 = vunpack.c.h.b16 %v136
    %v440 = vunpack.c.l.b16 %v137
    %v441 = vunpack.c.h.b16 %v137
    %v442 = vunpack.c.l.b16 %v138
    %v443 = vunpack.c.h.b16 %v138
    %v444 = vunpack.c.l.b16 %v139
    %v445 = vunpack.c.h.b16 %v139
    %v446 = vunpack.c.l.b16 %v140
    %v447 = vunpack.c.h.b16 %v140
    %v448 = vunpack.c.l.b16 %v141
    %v449 = vunpack.c.h.b16 %v141
    %v450 = vunpack.c.l.b16 %v142
    %v451 = vunpack.c.h.b16 %v142
    %v452 = vunpack.c.l.b16 %v143
    %v453 = vunpack.c.h.b16 %v143
    %v454 = vunpack.c.l.b16 %v144
    %v455 = vunpack.c.h.b16 %v144
    %v456 = vunpack.c.l.b16 %v145
    %v457 = vunpack.c.h.b16 %v145
    %v458 = vunpack.c.l.b16 %v146
    %v459 = vunpack.c.h.b16 %v146
    %v460 = vunpack.c.l.b16 %v147
    %v461 = vunpack.c.h.b16 %v147
    %v462 = vunpack.c.l.b16 %v148
    %v463 = vunpack.c.h.b16 %v148
    %v464 = vunpack.c.l.b16 %v149
    %v465 = vunpack.c.h.b16 %v149
    %v466 = vunpack.c.l.b16 %v150
    %v467 = vunpack.c.h.b16 %v150
    %v468 = vunpack.c.l.b16 %v151
    %v469 = vunpack.c.h.b16 %v151
    %v470 = vunpack.c.l.b16 %v152
    %v471 = vunpack.c.h.b16 %v152
    %v472 = vunpack.c.l.b16 %v153
    %v473 = vunpack.c.h.b16 %v153
    %v474 = vunpack.c.l.b16 %v154
    %v475 = vunpack.c.h.b16 %v154
    %v476 = vpack.c.b16 %v286, %v284
    %v477 = vpack.c.b16 %v287, %v285
    %v478 = vpack.c.b16 %v290, %v288
    %v479 = vpack.c.b16 %v291, %v289
    %v480 = vpack.c.b16 %v294, %v292
    %v481 = vpack.c.b16 %v295, %v293
    %v482 = vpack.c.b16 %v298, %v296
    %v483 = vpack.c.b16 %v299, %v297
    %v484 = vpack.c.b16 %v302, %v300
    %v485 = vpack.c.b16 %v303, %v301
    %v486 = vpack.c.b16 %v306, %v304
    %v487 = vpack.c.b16 %v307, %v305
    %v488 = vpack.c.b16 %v310, %v308
    %v489 = vpack.c.b16 %v311, %v309
    %v490 = vpack.c.b16 %v314, %v312
    %v491 = vpack.c.b16 %v315, %v313
    %v492 = vpack.c.b16 %v318, %v316
    %v493 = vpack.c.b16 %v319, %v317
    %v494 = vpack.c.b16 %v322, %v320
    %v495 = vpack.c.b16 %v323, %v321
    %v496 = vpack.c.b16 %v326, %v324
    %v497 = vpack.c.b16 %v327, %v325
    %v498 = vpack.c.b16 %v330, %v328
    %v499 = vpack.c.b16 %v331, %v329
    %v500 = vpack.c.b16 %v334, %v332
    %v501 = vpack.c.b16 %v335, %v333
    %v502 = vpack.c.b16 %v338, %v336
    %v503 = vpack.c.b16 %v339, %v337
    %v504 = vpack.c.b16 %v342, %v340
    %v505 = vpack.c.b16 %v343, %v341
    %v506 = vpack.c.b16 %v346, %v344
    %v507 = vpack.c.b16 %v347, %v345
    %v508 = vpack.c.b16 %v350, %v348
    %v509 = vpack.c.b16 %v351, %v349
    %v510 = vpack.c.b16 %v354, %v352
    %v511 = vpack.c.b16 %v355, %v353
    %v512 = vpack.c.b16 %v358, %v356
    %v513 = vpack.c.b16 %v359, %v357
    %v514 = vpack.c.b16 %v362, %v360
    %v515 = vpack.c.b16 %v363, %v361
    %v516 = vpack.c.b16 %v366, %v364
    %v517 = vpack.c.b16 %v367, %v365
    %v518 = vpack.c.b16 %v370, %v368
    %v519 = vpack.c.b16 %v371, %v369
    %v520 = vpack.c.b16 %v374, %v372
    %v521 = vpack.c.b16 %v375, %v373
    %v522 = vpack.c.b16 %v378, %v376
    %v523 = vpack.c.b16 %v379, %v377
    %v524 = vpack.c.b16 %v382, %v380
    %v525 = vpack.c.b16 %v383, %v381
    %v526 = vpack.c.b16 %v386, %v384
    %v527 = vpack.c.b16 %v387, %v385
    %v528 = vpack.c.b16 %v390, %v388
    %v529 = vpack.c.b16 %v391, %v389
    %v530 = vpack.c.b16 %v394, %v392
    %v531 = vpack.c.b16 %v395, %v393
    %v532 = vpack.c.b16 %v398, %v396
    %v533 = vpack.c.b16 %v399, %v397
    %v534 = vpack.c.b16 %v402, %v400
    %v535 = vpack.c.b16 %v403, %v401
    %v536 = vpack.c.b16 %v406, %v404
    %v537 = vpack.c.b16 %v407, %v405
    %v538 = vpack.c.b16 %v410, %v408
    %v539 = vpack.c.b16 %v411, %v409
    %v540 = vpack.c.b16 %v414, %v412
    %v541 = vpack.c.b16 %v415, %v413
    %v542 = vpack.c.b16 %v418, %v416
    %v543 = vpack.c.b16 %v419, %v417
    %v544 = vpack.c.b16 %v422, %v420
    %v545 = vpack.c.b16 %v423, %v421
    %v546 = vpack.c.b16 %v426, %v424
    %v547 = vpack.c.b16 %v427, %v425
    %v548 = vpack.c.b16 %v430, %v428
    %v549 = vpack.c.b16 %v431, %v429
    %v550 = vpack.c.b16 %v434, %v432
    %v551 = vpack.c.b16 %v435, %v433
    %v552 = vpack.c.b16 %v438, %v436
    %v553 = vpack.c.b16 %v439, %v437
    %v554 = vpack.c.b16 %v442, %v440
    %v555 = vpack.c.b16 %v443, %v441
    %v556 = vpack.c.b16 %v446, %v444
    %v557 = vpack.c.b16 %v447, %v445
    %v558 = vpack.c.b16 %v450, %v448
    %v559 = vpack.c.b16 %v451, %v449
    %v560 = vpack.c.b16 %v454, %v452
    %v561 = vpack.c.b16 %v455, %v453
    %v562 = vpack.c.b16 %v458, %v456
    %v563 = vpack.c.b16 %v459, %v457
    %v564 = vpack.c.b16 %v462, %v460
    %v565 = vpack.c.b16 %v463, %v461
    %v566 = vpack.c.b16 %v466, %v464
    %v567 = vpack.c.b16 %v467, %v465
    %v568 = vpack.c.b16 %v470, %v468
    %v569 = vpack.c.b16 %v471, %v469
    %v570 = vpack.c.b16 %v474, %v472
    %v571 = vpack.c.b16 %v475, %v473
    %668 = vmatprep.subr.bf16.mxu0 %v477
    %669 = vmatpush1.bf16.msra.mxu0 %v476
    %670 = vmatprep.subr.bf16.mxu0 %v479
    %671 = vmatpush1.bf16.msra.mxu0 %v478
    %672 = vmatprep.subr.bf16.mxu0 %v481
    %673 = vmatpush1.bf16.msra.mxu0 %v480
    %674 = vmatprep.subr.bf16.mxu0 %v483
    %675 = vmatpush1.bf16.msra.mxu0 %v482
    %676 = vmatprep.subr.bf16.mxu0 %v485
    %677 = vmatpush1.bf16.msra.mxu0 %v484
    %678 = vmatprep.subr.bf16.mxu0 %v487
    %679 = vmatpush1.bf16.msra.mxu0 %v486
    %680 = vmatprep.subr.bf16.mxu0 %v489
    %681 = vmatpush1.bf16.msra.mxu0 %v488
    %682 = vmatprep.subr.bf16.mxu0 %v491
    %683 = vmatpush1.bf16.msra.mxu0 %v490
    %684 = vmatprep.subr.bf16.mxu0 %v493
    %685 = vmatpush1.bf16.msra.mxu0 %v492
    %686 = vmatprep.subr.bf16.mxu0 %v495
    %687 = vmatpush1.bf16.msra.mxu0 %v494
    %688 = vmatprep.subr.bf16.mxu0 %v497
    %689 = vmatpush1.bf16.msra.mxu0 %v496
    %690 = vmatprep.subr.bf16.mxu0 %v499
    %691 = vmatpush1.bf16.msra.mxu0 %v498
    %692 = vmatprep.subr.bf16.mxu0 %v501
    %693 = vmatpush1.bf16.msra.mxu0 %v500
    %694 = vmatprep.subr.bf16.mxu0 %v503
    %695 = vmatpush1.bf16.msra.mxu0 %v502
    %696 = vmatprep.subr.bf16.mxu0 %v505
    %697 = vmatpush1.bf16.msra.mxu0 %v504
    %698 = vmatprep.subr.bf16.mxu0 %v507
    %699 = vmatpush1.bf16.msra.mxu0 %v506
    %700 = vmatprep.mubr.bf16.mxu0 %v177
    %701 = vmatmul.mubr.bf16.gmra.mrb[0].mxu0 %v176
    %v702 = vpop.f32.mrb[0].mxu0
    %v703 = vadd.f32 %v160, %v702
    %v704 = vpop.f32.mrb[0].mxu0
    %v705 = vadd.f32 %v164, %v704
    %v706 = vpop.f32.mrb[0].mxu0
    %v707 = vpop.f32.mrb[0].mxu0
    %708 = vdwg.mxu0
    %709 = vmatprep.subr.bf16.mxu0 %v509
    %710 = vmatpush1.bf16.msra.mxu0 %v508
    %711 = vmatprep.subr.bf16.mxu0 %v511
    %712 = vmatpush1.bf16.msra.mxu0 %v510
    %713 = vmatprep.subr.bf16.mxu0 %v513
    %714 = vmatpush1.bf16.msra.mxu0 %v512
    %715 = vmatprep.subr.bf16.mxu0 %v515
    %716 = vmatpush1.bf16.msra.mxu0 %v514
    %717 = vmatprep.subr.bf16.mxu0 %v517
    %718 = vmatpush1.bf16.msra.mxu0 %v516
    %719 = vmatprep.subr.bf16.mxu0 %v519
    %720 = vmatpush1.bf16.msra.mxu0 %v518
    %721 = vmatprep.subr.bf16.mxu0 %v521
    %722 = vmatpush1.bf16.msra.mxu0 %v520
    %723 = vmatprep.subr.bf16.mxu0 %v523
    %724 = vmatpush1.bf16.msra.mxu0 %v522
    %725 = vmatprep.subr.bf16.mxu0 %v525
    %726 = vmatpush1.bf16.msra.mxu0 %v524
    %727 = vmatprep.subr.bf16.mxu0 %v527
    %728 = vmatpush1.bf16.msra.mxu0 %v526
    %729 = vmatprep.subr.bf16.mxu0 %v529
    %730 = vmatpush1.bf16.msra.mxu0 %v528
    %731 = vmatprep.subr.bf16.mxu0 %v531
    %732 = vmatpush1.bf16.msra.mxu0 %v530
    %733 = vmatprep.subr.bf16.mxu0 %v533
    %734 = vmatpush1.bf16.msra.mxu0 %v532
    %735 = vmatprep.subr.bf16.mxu0 %v535
    %736 = vmatpush1.bf16.msra.mxu0 %v534
    %737 = vmatprep.subr.bf16.mxu0 %v537
    %738 = vmatpush1.bf16.msra.mxu0 %v536
    %739 = vmatprep.subr.bf16.mxu0 %v539
    %740 = vmatpush1.bf16.msra.mxu0 %v538
    %741 = vmatprep.mubr.bf16.mxu0 %v179
    %742 = vmatmul.mubr.bf16.gmra.mrb[0].mxu0 %v178
    %v743 = vpop.f32.mrb[0].mxu0
    %v744 = vadd.f32 %v703, %v743
    %v745 = vpop.f32.mrb[0].mxu0
    %v746 = vadd.f32 %v705, %v745
    %v747 = vpop.f32.mrb[0].mxu0
    %v748 = vpop.f32.mrb[0].mxu0
    %749 = vdwg.mxu0
    %750 = vmatprep.subr.bf16.mxu0 %v541
    %751 = vmatpush1.bf16.msra.mxu0 %v540
    %752 = vmatprep.subr.bf16.mxu0 %v543
    %753 = vmatpush1.bf16.msra.mxu0 %v542
    %754 = vmatprep.subr.bf16.mxu0 %v545
    %755 = vmatpush1.bf16.msra.mxu0 %v544
    %756 = vmatprep.subr.bf16.mxu0 %v547
    %757 = vmatpush1.bf16.msra.mxu0 %v546
    %758 = vmatprep.subr.bf16.mxu0 %v549
    %759 = vmatpush1.bf16.msra.mxu0 %v548
    %760 = vmatprep.subr.bf16.mxu0 %v551
    %761 = vmatpush1.bf16.msra.mxu0 %v550
    %762 = vmatprep.subr.bf16.mxu0 %v553
    %763 = vmatpush1.bf16.msra.mxu0 %v552
    %764 = vmatprep.subr.bf16.mxu0 %v555
    %765 = vmatpush1.bf16.msra.mxu0 %v554
    %766 = vmatprep.subr.bf16.mxu0 %v557
    %767 = vmatpush1.bf16.msra.mxu0 %v556
    %768 = vmatprep.subr.bf16.mxu0 %v559
    %769 = vmatpush1.bf16.msra.mxu0 %v558
    %770 = vmatprep.subr.bf16.mxu0 %v561
    %771 = vmatpush1.bf16.msra.mxu0 %v560
    %772 = vmatprep.subr.bf16.mxu0 %v563
    %773 = vmatpush1.bf16.msra.mxu0 %v562
    %774 = vmatprep.subr.bf16.mxu0 %v565
    %775 = vmatpush1.bf16.msra.mxu0 %v564
    %776 = vmatprep.subr.bf16.mxu0 %v567
    %777 = vmatpush1.bf16.msra.mxu0 %v566
    %778 = vmatprep.subr.bf16.mxu0 %v569
    %779 = vmatpush1.bf16.msra.mxu0 %v568
    %780 = vmatprep.subr.bf16.mxu0 %v571
    %781 = vmatpush1.bf16.msra.mxu0 %v570
    %782 = vmatprep.mubr.bf16.mxu0 %v181
    %783 = vmatmul.mubr.bf16.gmra.mrb[0].mxu0 %v180
    %v784 = vpop.f32.mrb[0].mxu0
    %v785 = vadd.f32 %v744, %v784
    %v786 = vpop.f32.mrb[0].mxu0
    %v787 = vadd.f32 %v746, %v786
    %v788 = vpop.f32.mrb[0].mxu0
    %v789 = vpop.f32.mrb[0].mxu0
    %790 = vdwg.mxu0
    %v791 = vmax.f32 %v785, 0.0
    %v792 = vmax.f32 %v787, 0.0
    %v793 = vpack.c.bf16 %v791, %v791
    %v794 = vpack.c.bf16 %v792, %v792
    %v795 = vld [vmem:[#allocation5] sm:$0xf]
    %v796 = vld [vmem:[#allocation5 + $0x4] sm:$0xf]
    %v797 = vld [vmem:[#allocation5 + $0x8] sm:$0xf]
    %v798 = vld [vmem:[#allocation5 + $0xc] sm:$0xf]
    %v799 = vld [vmem:[#allocation5 + $0x10] sm:$0xf]
    %v800 = vld [vmem:[#allocation5 + $0x14] sm:$0xf]
    %v801 = vld [vmem:[#allocation5 + $0x18] sm:$0xf]
    %v802 = vld [vmem:[#allocation5 + $0x1c] sm:$0xf]
    %v803 = vld [vmem:[#allocation5 + $0x20] sm:$0xf]
    %v804 = vld [vmem:[#allocation5 + $0x24] sm:$0xf]
    %v805 = vld [vmem:[#allocation5 + $0x28] sm:$0xf]
    %v806 = vld [vmem:[#allocation5 + $0x2c] sm:$0xf]
    %v807 = vld [vmem:[#allocation5 + $0x30] sm:$0xf]
    %v808 = vld [vmem:[#allocation5 + $0x34] sm:$0xf]
    %v809 = vld [vmem:[#allocation5 + $0x38] sm:$0xf]
    %v810 = vld [vmem:[#allocation5 + $0x3c] sm:$0xf]
    %v811 = vld [vmem:[#allocation5 + $0x40] sm:$0xf]
    %v812 = vld [vmem:[#allocation5 + $0x44] sm:$0xf]
    %v813 = vld [vmem:[#allocation5 + $0x48] sm:$0xf]
    %v814 = vld [vmem:[#allocation5 + $0x4c] sm:$0xf]
    %v815 = vld [vmem:[#allocation5 + $0x50] sm:$0xf]
    %v816 = vld [vmem:[#allocation5 + $0x54] sm:$0xf]
    %v817 = vld [vmem:[#allocation5 + $0x58] sm:$0xf]
    %v818 = vld [vmem:[#allocation5 + $0x5c] sm:$0xf]
    %v819 = vld [vmem:[#allocation5 + $0x60] sm:$0xf]
    %v820 = vld [vmem:[#allocation5 + $0x64] sm:$0xf]
    %v821 = vld [vmem:[#allocation5 + $0x68] sm:$0xf]
    %v822 = vld [vmem:[#allocation5 + $0x6c] sm:$0xf]
    %v823 = vld [vmem:[#allocation5 + $0x70] sm:$0xf]
    %v824 = vld [vmem:[#allocation5 + $0x74] sm:$0xf]
    %v825 = vld [vmem:[#allocation5 + $0x78] sm:$0xf]
    %v826 = vld [vmem:[#allocation5 + $0x7c] sm:$0xf]
    %v827 = vld [vmem:[%s4] sm:$0x1]
    %v829 = vlaneseq
    %v830 = vshrl.u32 %v829, 7
    %v831 = vsub.s32 0, %v830
    %v832 = vrot.slane %v827, %v831
    %v866 = vunpack.c.l.b16 %v795
    %v867 = vunpack.c.l.b16 %v796
    %v868 = vunpack.c.l.b16 %v797
    %v869 = vunpack.c.l.b16 %v798
    %v870 = vunpack.c.l.b16 %v799
    %v871 = vunpack.c.l.b16 %v800
    %v872 = vunpack.c.l.b16 %v801
    %v873 = vunpack.c.l.b16 %v802
    %v874 = vunpack.c.l.b16 %v803
    %v875 = vunpack.c.l.b16 %v804
    %v876 = vunpack.c.l.b16 %v805
    %v877 = vunpack.c.l.b16 %v806
    %v878 = vunpack.c.l.b16 %v807
    %v879 = vunpack.c.l.b16 %v808
    %v880 = vunpack.c.l.b16 %v809
    %v881 = vunpack.c.l.b16 %v810
    %v882 = vunpack.c.l.b16 %v811
    %v883 = vunpack.c.l.b16 %v812
    %v884 = vunpack.c.l.b16 %v813
    %v885 = vunpack.c.l.b16 %v814
    %v886 = vunpack.c.l.b16 %v815
    %v887 = vunpack.c.l.b16 %v816
    %v888 = vunpack.c.l.b16 %v817
    %v889 = vunpack.c.l.b16 %v818
    %v890 = vunpack.c.l.b16 %v819
    %v891 = vunpack.c.l.b16 %v820
    %v892 = vunpack.c.l.b16 %v821
    %v893 = vunpack.c.l.b16 %v822
    %v894 = vunpack.c.l.b16 %v823
    %v895 = vunpack.c.l.b16 %v824
    %v896 = vunpack.c.l.b16 %v825
    %v897 = vunpack.c.l.b16 %v826
    %v898 = vpack.c.b16 %v867, %v866
    %v899 = vpack.c.b16 %v869, %v868
    %v900 = vpack.c.b16 %v871, %v870
    %v901 = vpack.c.b16 %v873, %v872
    %v902 = vpack.c.b16 %v875, %v874
    %v903 = vpack.c.b16 %v877, %v876
    %v904 = vpack.c.b16 %v879, %v878
    %v905 = vpack.c.b16 %v881, %v880
    %v906 = vpack.c.b16 %v883, %v882
    %v907 = vpack.c.b16 %v885, %v884
    %v908 = vpack.c.b16 %v887, %v886
    %v909 = vpack.c.b16 %v889, %v888
    %v910 = vpack.c.b16 %v891, %v890
    %v911 = vpack.c.b16 %v893, %v892
    %v912 = vpack.c.b16 %v895, %v894
    %v913 = vpack.c.b16 %v897, %v896
    %930 = vmatprep.subr.bf16.mxu0 0
    %931 = vmatpush1.bf16.msra.mxu0 %v898
    %932 = vmatprep.subr.bf16.mxu0 0
    %933 = vmatpush1.bf16.msra.mxu0 %v899
    %934 = vmatprep.subr.bf16.mxu0 0
    %935 = vmatpush1.bf16.msra.mxu0 %v900
    %936 = vmatprep.subr.bf16.mxu0 0
    %937 = vmatpush1.bf16.msra.mxu0 %v901
    %938 = vmatprep.subr.bf16.mxu0 0
    %939 = vmatpush1.bf16.msra.mxu0 %v902
    %940 = vmatprep.subr.bf16.mxu0 0
    %941 = vmatpush1.bf16.msra.mxu0 %v903
    %942 = vmatprep.subr.bf16.mxu0 0
    %943 = vmatpush1.bf16.msra.mxu0 %v904
    %944 = vmatprep.subr.bf16.mxu0 0
    %945 = vmatpush1.bf16.msra.mxu0 %v905
    %946 = vmatprep.subr.bf16.mxu0 0
    %947 = vmatpush1.bf16.msra.mxu0 %v906
    %948 = vmatprep.subr.bf16.mxu0 0
    %949 = vmatpush1.bf16.msra.mxu0 %v907
    %950 = vmatprep.subr.bf16.mxu0 0
    %951 = vmatpush1.bf16.msra.mxu0 %v908
    %952 = vmatprep.subr.bf16.mxu0 0
    %953 = vmatpush1.bf16.msra.mxu0 %v909
    %954 = vmatprep.subr.bf16.mxu0 0
    %955 = vmatpush1.bf16.msra.mxu0 %v910
    %956 = vmatprep.subr.bf16.mxu0 0
    %957 = vmatpush1.bf16.msra.mxu0 %v911
    %958 = vmatprep.subr.bf16.mxu0 0
    %959 = vmatpush1.bf16.msra.mxu0 %v912
    %960 = vmatprep.subr.bf16.mxu0 0
    %961 = vmatpush1.bf16.msra.mxu0 %v913
    %962 = vmatprep.mubr.bf16.mxu0 %v794
    %963 = vmatmul.mubr.bf16.gmra.mrb[0].mxu0 %v793
    %v964 = vpop.f32.mrb[0].mxu0
    %v965 = vadd.f32 %v832, %v964
    %v966 = vpop.f32.mrb[0].mxu0
    %v967 = vpop.f32.mrb[0].mxu0
    %v968 = vpop.f32.mrb[0].mxu0
    %969 = vdwg.mxu0
    %v970 = vmax.f32 %v965, 0.0
    %v971 = vpack.c.bf16 %v970, %v970
    %v972 = vld [vmem:[%s5] sm:$0xf]
    %v973 = vld [vmem:[%s5 + $0x4] sm:$0xf]
    %v974 = vld [vmem:[%s5 + $0x8] sm:$0xf]
    %v975 = vld [vmem:[%s5 + $0xc] sm:$0xf]
    %v976 = vld [vmem:[%s5 + $0x10] sm:$0xf]
    %v977 = vld [vmem:[%s5 + $0x14] sm:$0xf]
    %v978 = vld [vmem:[%s5 + $0x18] sm:$0xf]
    %v979 = vld [vmem:[%s5 + $0x1c] sm:$0xf]
    %v980 = vld [vmem:[%s5 + $0x20] sm:$0xf]
    %v981 = vld [vmem:[%s5 + $0x24] sm:$0xf]
    %v982 = vld [vmem:[%s5 + $0x28] sm:$0xf]
    %v983 = vld [vmem:[%s5 + $0x2c] sm:$0xf]
    %v984 = vld [vmem:[%s5 + $0x30] sm:$0xf]
    %v985 = vld [vmem:[%s5 + $0x34] sm:$0xf]
    %v986 = vld [vmem:[%s5 + $0x38] sm:$0xf]
    %v987 = vld [vmem:[%s5 + $0x3c] sm:$0xf]
    %v988 = vld [vmem:[%s6] sm:$0x1]
    %v990 = vlaneseq
    %v991 = vshrl.u32 %v990, 7
    %v992 = vsub.s32 0, %v991
    %v993 = vrot.slane %v988, %v992
    %v1011 = vunpack.c.l.b16 %v972
    %v1012 = vunpack.c.l.b16 %v973
    %v1013 = vunpack.c.l.b16 %v974
    %v1014 = vunpack.c.l.b16 %v975
    %v1015 = vunpack.c.l.b16 %v976
    %v1016 = vunpack.c.l.b16 %v977
    %v1017 = vunpack.c.l.b16 %v978
    %v1018 = vunpack.c.l.b16 %v979
    %v1019 = vunpack.c.l.b16 %v980
    %v1020 = vunpack.c.l.b16 %v981
    %v1021 = vunpack.c.l.b16 %v982
    %v1022 = vunpack.c.l.b16 %v983
    %v1023 = vunpack.c.l.b16 %v984
    %v1024 = vunpack.c.l.b16 %v985
    %v1025 = vunpack.c.l.b16 %v986
    %v1026 = vunpack.c.l.b16 %v987
    %v1027 = vpack.c.b16 %v1012, %v1011
    %v1028 = vpack.c.b16 %v1014, %v1013
    %v1029 = vpack.c.b16 %v1016, %v1015
    %v1030 = vpack.c.b16 %v1018, %v1017
    %v1031 = vpack.c.b16 %v1020, %v1019
    %v1032 = vpack.c.b16 %v1022, %v1021
    %v1033 = vpack.c.b16 %v1024, %v1023
    %v1034 = vpack.c.b16 %v1026, %v1025
    %1043 = vmatprep.subr.bf16.mxu0 0
    %1044 = vmatpush1.bf16.msra.mxu0 %v1027
    %1045 = vmatprep.subr.bf16.mxu0 0
    %1046 = vmatpush1.bf16.msra.mxu0 %v1028
    %1047 = vmatprep.subr.bf16.mxu0 0
    %1048 = vmatpush1.bf16.msra.mxu0 %v1029
    %1049 = vmatprep.subr.bf16.mxu0 0
    %1050 = vmatpush1.bf16.msra.mxu0 %v1030
    %1051 = vmatprep.subr.bf16.mxu0 0
    %1052 = vmatpush1.bf16.msra.mxu0 %v1031
    %1053 = vmatprep.subr.bf16.mxu0 0
    %1054 = vmatpush1.bf16.msra.mxu0 %v1032
    %1055 = vmatprep.subr.bf16.mxu0 0
    %1056 = vmatpush1.bf16.msra.mxu0 %v1033
    %1057 = vmatprep.subr.bf16.mxu0 0
    %1058 = vmatpush1.bf16.msra.mxu0 %v1034
    %1059 = vmatprep.subr.bf16.mxu0 0
    %1060 = vmatpush1.bf16.msra.mxu0 0
    %1061 = vmatprep.subr.bf16.mxu0 0
    %1062 = vmatpush1.bf16.msra.mxu0 0
    %1063 = vmatprep.subr.bf16.mxu0 0
    %1064 = vmatpush1.bf16.msra.mxu0 0
    %1065 = vmatprep.subr.bf16.mxu0 0
    %1066 = vmatpush1.bf16.msra.mxu0 0
    %1067 = vmatprep.subr.bf16.mxu0 0
    %1068 = vmatpush1.bf16.msra.mxu0 0
    %1069 = vmatprep.subr.bf16.mxu0 0
    %1070 = vmatpush1.bf16.msra.mxu0 0
    %1071 = vmatprep.subr.bf16.mxu0 0
    %1072 = vmatpush1.bf16.msra.mxu0 0
    %1073 = vmatprep.subr.bf16.mxu0 0
    %1074 = vmatpush1.bf16.msra.mxu0 0
    %1075 = vmatprep.mubr.bf16.mxu0 0
    %1076 = vmatmul.mubr.bf16.gmra.mrb[0].mxu0 %v971
    %v1077 = vpop.f32.mrb[0].mxu0
    %v1078 = vadd.f32 %v993, %v1077
    %v1079 = vpop.f32.mrb[0].mxu0
    %v1080 = vpop.f32.mrb[0].mxu0
    %v1081 = vpop.f32.mrb[0].mxu0
    %1082 = vdwg.mxu0
    %1083 = vst [vmem:[#allocation7] sm:$0xff] %v1078
    // Predicated region
    $region38: #{_fc3_forward_impl.1} parent=1 // pred_check
      _
    $region39: #{_fc3_forward_impl.1} parent=1 // pred_check_branch
      %1085 = sbr.rel (0) target = $region41
    $region40: #{_fc3_forward_impl.1} parent=1 // pred_region
      %s1087 = ssub.s32 128, 128
      %1088 = vsyncadd [#allocation4], %s1087
      %s1090 = sshll.u32 [#allocation7], 4
      %s1091 = int_to_ptr.vmem [resolvable:$true] %s1090
      %1093 = dma.vmem_to_hbm [thread:$0]  %s1091, 128, %s7, [#allocation4]
    $region41: #{_fc3_forward_impl.1} parent=1 // pred_fallthru
      _
    // Predicated region
    $region42: #{_fc3_forward_impl.1} parent=1 // pred_check
      _
    $region43: #{_fc3_forward_impl.1} parent=1 // pred_check_branch
      %1095 = sbr.rel (0) target = $region45
    $region44: #{_fc3_forward_impl.1} parent=1 // pred_region
      %1096 = dma.done [#allocation4], 128
    $region45: #{_fc3_forward_impl.1} parent=1 // pred_fallthru
      _
    %1097 = vsyncpa [#allocation3], 1
    %1098 = vsyncpa [#allocation6], 1
    %1099 = vsyncpa [#allocation4], 1

</llo_original>
